<compile_context>
chip_gen: v7x
topology: tpu7x:2x2x1
jax: 0.10.0
libtpu: 0.0.40
codegen_flags: <defaults>
</compile_context>

<pallas_src>
import jax
import jax.numpy as jnp
from jax.experimental import pallas as pl
from jax.experimental.pallas import tpu as pltpu


def eca_kernel(x_ref, p_ref, w1_ref, o_ref):
    """One batch-tile of the fused ECA forward.

    x_ref:  (Bt, C, HW)  input tile, native dtype (f32 / bf16)
    p_ref:  (K+1,) SMEM  conv1d taps [0..K-1] followed by the conv1d bias (f32)
    w1_ref: (1, C)       1x1-conv2d weights as a row (f32)
    o_ref:  (Bt, HW)     dense output tile   [or (Bt, 1, HW) fallback layout]
    """
    Bt, C, HW = x_ref.shape
    K = p_ref.shape[0] - 1
    pad = (K - 1) // 2
    inv_hw = 1.0 / HW

    x = x_ref[...]                                            # (Bt, C, HW)

    # ---- Global average pool on the MXU (one streaming pass over x).
    #      (Bt,1,HW) contracted with (Bt,C,HW) over HW -> (Bt,1,C), f32 acc.
    ones_row = jnp.ones((Bt, 1, HW), dtype=x.dtype)
    sums = jnp.einsum("bxh,bch->bxc", ones_row, x,
                      preferred_element_type=jnp.float32)     # (Bt, 1, C)
    means = sums * inv_hw                                     # (Bt, 1, C) f32

    # ---- k-tap channel conv as K shifted, zero-padded copies: O(K*C).
    if pad > 0:
        zpad = jnp.zeros((Bt, 1, pad), jnp.float32)
        mp = jnp.concatenate([zpad, means, zpad], axis=2)     # (Bt, 1, C+2*pad)
    else:
        mp = means
    y = jnp.zeros((Bt, 1, C), jnp.float32)
    for k in range(K):                                        # K is tiny (3/5)
        y = y + p_ref[k] * mp[:, :, k:k + C]
    y = y + p_ref[K]                                          # conv1d bias

    # ---- Fold sigmoid gate and the 1x1-conv weights into one row of scales.
    gate = jax.nn.sigmoid(y) * w1_ref[...]                    # (Bt, 1, C) f32

    # ---- Channel reduction on the MXU: (Bt,1,C) @ (Bt,C,HW) -> (Bt,1,HW).
    # NOTE: the gate is cast to the input dtype before the dot (documented
    # tolerance relaxation for bf16 inputs).
    res = jnp.einsum("boc,bch->boh", gate.astype(x.dtype), x,
                     preferred_element_type=jnp.float32)      # (Bt, 1, HW)

    if len(o_ref.shape) == 2:
        # Dense (Bt, HW) block: write each batch row into its own sublane so
        # the writeback DMA to HBM is lane+sublane dense (one packed tile).
        for b in range(Bt):
            o_ref[pl.ds(b, 1), :] = res[b].astype(o_ref.dtype)     # (1, HW)
    else:
        # Fallback (Bt, 1, HW) layout when a dense 2-D block is not possible.
        o_ref[...] = res.astype(o_ref.dtype)


def _choose_tiling(B, C, HW, itemsize):
    """Generation-aware batch-tile size, grid, VMEM budget and output layout."""
    try:
        vmem_cap = int(pltpu.get_tpu_info().vmem_capacity_bytes)
    except Exception:
        vmem_cap = 64 << 20                       # conservative (v7x per-TC)
    small_vmem = vmem_cap <= (64 << 20)           # v7x-class budget
    target_block = (3 << 20) if small_vmem else (12 << 20)
    hard_cap = 64                                 # bounds in-kernel unrolling
    per_b = max(1, C * HW * itemsize)

    bt = max(1, min(B, hard_cap, target_block // per_b))

    # Keep >=4 grid steps (>=2 per v7x TensorCore), or >=2 steps, when B allows
    # and the resulting blocks stay big enough to amortize the ~0.35us/step
    # pipeline overhead (tiny blocks measure at ~29% of HBM roofline).
    min_block = 512 << 10
    for steps in (4, 2):
        if B >= steps and (B // steps) * per_b >= min_block:
            bt = min(bt, B // steps)
            break

    # Prefer a sublane-dense output block (bt % 8 == 0 or bt == B) when VMEM
    # allows and it does not collapse the grid below the pipelining target.
    if bt < 8 <= B and 8 * per_b <= (vmem_cap // 6) and pl.cdiv(B, 8) >= min(4, B):
        bt = 8
    if B > bt > 8:
        bt -= bt % 8
    dense_out = (bt % 8 == 0) or (bt == B)

    grid_n = pl.cdiv(B, bt)                       # bt need not divide B

    # Deeper input buffering only where VMEM is plentiful (v5e/v6e: 128 MiB).
    deep_buffer = (not small_vmem) and grid_n >= 4
    n_in_bufs = 3 if deep_buffer else 2

    in_block = bt * per_b
    out_block = bt * HW * itemsize
    misc = bt * HW * (itemsize + 32) + 64 * (C + 256) * 4 + (2 << 20)
    needed = n_in_bufs * in_block + 2 * out_block + misc
    vmem_limit = int(min(max(needed, 32 << 20), (vmem_cap * 3) // 4))
    return bt, grid_n, vmem_limit, dense_out, deep_buffer


def eca_attention(x, conv1d_w, conv1d_b, conv2d_w):
    """x: (B,C,H,W).  conv1d_w: (1,1,K), conv1d_b: (1,), conv2d_w: (1,C,1,1)."""
    B, C, H, W = x.shape
    HW = H * W
    K = conv1d_w.shape[-1]

    x_flat = x.reshape(B, C, HW)                  # metadata-only reshape
    params = jnp.concatenate([conv1d_w.reshape(K).astype(jnp.float32),
                              conv1d_b.reshape(1).astype(jnp.float32)])
    w1 = conv2d_w.reshape(1, C).astype(jnp.float32)

    bt, grid_n, vmem_limit, dense_out, deep_buffer = _choose_tiling(
        B, C, HW, x.dtype.itemsize)

    x_spec = pl.BlockSpec((bt, C, HW), lambda i: (i, 0, 0))
    if deep_buffer:
        try:
            x_spec = pl.BlockSpec((bt, C, HW), lambda i: (i, 0, 0),
                                  pipeline_mode=pl.Buffered(3))
        except TypeError:
            pass                                  # older BlockSpec signature

    if dense_out:
        out_shape = jax.ShapeDtypeStruct((B, HW), x.dtype)
        out_spec = pl.BlockSpec((bt, HW), lambda i: (i, 0))
    else:
        out_shape = jax.ShapeDtypeStruct((B, 1, HW), x.dtype)
        out_spec = pl.BlockSpec((bt, 1, HW), lambda i: (i, 0, 0))

    out = pl.pallas_call(
        eca_kernel,
        out_shape=out_shape,
        grid=(grid_n,),
        in_specs=[
            x_spec,                                                   # x tile
            pl.BlockSpec(memory_space=pltpu.MemorySpace.SMEM),        # taps+bias
            pl.BlockSpec((1, C), lambda i: (0, 0)),                   # w1 row
        ],
        out_specs=out_spec,
        compiler_params=pltpu.CompilerParams(
            dimension_semantics=("parallel",),
            vmem_limit_bytes=vmem_limit,
        ),
    )(x_flat, params, w1)
    return out.reshape(B, 1, H, W)


def eca_reference(x, conv1d_w, conv1d_b, conv2d_w):
    """Pure-JAX reference matching the PyTorch forward (f32 math)."""
    B, C, H, W = x.shape
    K = conv1d_w.shape[-1]
    pad = (K - 1) // 2
    xf = x.astype(jnp.float32)
    k = conv1d_w.reshape(K).astype(jnp.float32)
    m = jnp.mean(xf, axis=(2, 3))                          # (B, C)
    mp = jnp.pad(m, ((0, 0), (pad, pad)))                  # zero-padded channels
    y = sum(k[kk] * mp[:, kk:kk + C] for kk in range(K)) \
        + conv1d_b.reshape(1,).astype(jnp.float32)
    a = jax.nn.sigmoid(y)                                  # (B, C)
    z = xf * a[:, :, None, None]
    w1 = conv2d_w.reshape(C).astype(jnp.float32)
    return jnp.einsum("bchw,c->bhw", z, w1)[:, None]       # (B, 1, H, W)


if __name__ == "__main__":
    B, C, H, W = 2, 4, 16, 16
    kernel_size = 3

    key = jax.random.PRNGKey(0)
    kx, k1, k2, k3 = jax.random.split(key, 4)

    x = jax.random.normal(kx, (B, C, H, W), dtype=jnp.float32)
    conv1d_w = jax.random.normal(k1, (1, 1, kernel_size), dtype=jnp.float32) * 0.5
    conv1d_b = jax.random.normal(k2, (1,), dtype=jnp.float32) * 0.1
    conv2d_w = jax.random.normal(k3, (1, C, 1, 1), dtype=jnp.float32) * 0.5

    # f32 path (MXU f32 matmul passes keep the error well below this tolerance).
    out = jax.block_until_ready(eca_attention(x, conv1d_w, conv1d_b, conv2d_w))
    ref = eca_reference(x, conv1d_w, conv1d_b, conv2d_w)
    assert out.shape == (B, 1, H, W)
    assert jnp.allclose(out, ref, atol=1e-4, rtol=1e-4), "f32 mismatch vs reference"

    # bf16 path (native dtype streamed straight into the kernel, f32 accumulation;
    # the fused gate is bf16-rounded before the final dot -> looser tolerance).
    x_bf16 = x.astype(jnp.bfloat16)
    out_bf16 = jax.block_until_ready(eca_attention(x_bf16, conv1d_w, conv1d_b, conv2d_w))
    ref_bf16 = eca_reference(x_bf16, conv1d_w, conv1d_b, conv2d_w)
    assert jnp.allclose(out_bf16.astype(jnp.float32), ref_bf16, atol=5e-2, rtol=5e-2), \
        "bf16 mismatch vs reference"

    print("KERNEL_OK")
</pallas_src>

<mosaic_0001>
module attributes {stable_mosaic.version = 11 : i64} {
  func.func @eca_kernel(%arg0: i32, %arg1: memref<2x4x256xf32, #tpu.memory_space<vmem>>, %arg2: memref<4xf32, #tpu.memory_space<smem>>, %arg3: memref<1x4xf32, #tpu.memory_space<vmem>>, %arg4: memref<2x256xf32, #tpu.memory_space<vmem>>) attributes {dimension_semantics = [#tpu.dimension_semantics<parallel>], iteration_bounds = array<i64: 1>, scalar_prefetch = 0 : i64, scratch_operands = 0 : i64, tpu.core_type = #tpu.core_type<tc>, window_params = [{transform_indices = @transform_0, window_bounds = array<i64: 2, 4, 256>}, {transform_indices = @transform_1, window_bounds = array<i64: 4>}, {pipeline_mode = #tpu.pipeline_mode<synchronous>, transform_indices = @transform_2, window_bounds = array<i64: 1, 4>}, {transform_indices = @transform_3, window_bounds = array<i64: 2, 256>}]} {
    %c0 = arith.constant 0 : index
    %c0_0 = arith.constant 0 : index
    %c0_1 = arith.constant 0 : index
    %0 = vector.load %arg1[%c0, %c0_0, %c0_1] : memref<2x4x256xf32, #tpu.memory_space<vmem>>, vector<2x4x256xf32>
    %cst = arith.constant 1.000000e+00 : f32
    %1 = vector.broadcast %cst : f32 to vector<2x1x256xf32>
    "tpu.trace_start"() <{level = 10 : i32, message = "bxh,bch->bxc"}> : () -> ()
    %cst_2 = arith.constant dense<0.000000e+00> : vector<2x1x4xf32>
    %2 = tpu.matmul %1, %0, %cst_2 {dimension_numbers = #tpu.dot_dimension_numbers<[2], [2], [1], [1], [0, 0, 0, 1, 1, 1], [0], [0]>} : vector<2x1x256xf32>, vector<2x4x256xf32>, vector<2x1x4xf32> -> vector<2x1x4xf32>
    "tpu.trace_stop"() : () -> ()
    %cst_3 = arith.constant 3.906250e-03 : f32
    %3 = vector.broadcast %cst_3 : f32 to vector<2x1x4xf32>
    %4 = arith.mulf %2, %3 : vector<2x1x4xf32>
    %cst_4 = arith.constant 0.000000e+00 : f32
    %5 = vector.broadcast %cst_4 : f32 to vector<2x1x1xf32>
    %6 = tpu.concatenate %5, %4, %5 in 2 : vector<2x1x1xf32>, vector<2x1x4xf32>, vector<2x1x1xf32> -> vector<2x1x6xf32>
    %cst_5 = arith.constant 0.000000e+00 : f32
    %7 = vector.broadcast %cst_5 : f32 to vector<2x1x4xf32>
    %c0_6 = arith.constant 0 : index
    %8 = memref.load %arg2[%c0_6] : memref<4xf32, #tpu.memory_space<smem>>
    %9 = vector.extract_strided_slice %6 {offsets = [0, 0, 0], sizes = [2, 1, 4], strides = [1, 1, 1]} : vector<2x1x6xf32> to vector<2x1x4xf32>
    %10 = vector.broadcast %8 : f32 to vector<2x1x4xf32>
    %11 = arith.mulf %10, %9 : vector<2x1x4xf32>
    %12 = arith.addf %7, %11 : vector<2x1x4xf32>
    %c1 = arith.constant 1 : index
    %13 = memref.load %arg2[%c1] : memref<4xf32, #tpu.memory_space<smem>>
    %14 = vector.extract_strided_slice %6 {offsets = [0, 0, 1], sizes = [2, 1, 4], strides = [1, 1, 1]} : vector<2x1x6xf32> to vector<2x1x4xf32>
    %15 = vector.broadcast %13 : f32 to vector<2x1x4xf32>
    %16 = arith.mulf %15, %14 : vector<2x1x4xf32>
    %17 = arith.addf %12, %16 : vector<2x1x4xf32>
    %c2 = arith.constant 2 : index
    %18 = memref.load %arg2[%c2] : memref<4xf32, #tpu.memory_space<smem>>
    %19 = vector.extract_strided_slice %6 {offsets = [0, 0, 2], sizes = [2, 1, 4], strides = [1, 1, 1]} : vector<2x1x6xf32> to vector<2x1x4xf32>
    %20 = vector.broadcast %18 : f32 to vector<2x1x4xf32>
    %21 = arith.mulf %20, %19 : vector<2x1x4xf32>
    %22 = arith.addf %17, %21 : vector<2x1x4xf32>
    %c3 = arith.constant 3 : index
    %23 = memref.load %arg2[%c3] : memref<4xf32, #tpu.memory_space<smem>>
    %24 = vector.broadcast %23 : f32 to vector<2x1x4xf32>
    %25 = arith.addf %22, %24 : vector<2x1x4xf32>
    %26 = arith.negf %25 : vector<2x1x4xf32>
    %27 = math.exp %26 : vector<2x1x4xf32>
    %cst_7 = arith.constant 1.000000e+00 : f32
    %28 = vector.broadcast %cst_7 : f32 to vector<2x1x4xf32>
    %29 = arith.addf %28, %27 : vector<2x1x4xf32>
    %30 = arith.divf %28, %29 : vector<2x1x4xf32>
    %c0_8 = arith.constant 0 : index
    %c0_9 = arith.constant 0 : index
    %31 = vector.load %arg3[%c0_8, %c0_9] : memref<1x4xf32, #tpu.memory_space<vmem>>, vector<1x4xf32>
    %32 = vector.shape_cast %31 : vector<1x4xf32> to vector<1x1x4xf32>
    %33 = vector.broadcast %32 : vector<1x1x4xf32> to vector<2x1x4xf32>
    %34 = arith.mulf %30, %33 : vector<2x1x4xf32>
    "tpu.trace_start"() <{level = 10 : i32, message = "boc,bch->boh"}> : () -> ()
    %cst_10 = arith.constant dense<0.000000e+00> : vector<2x1x256xf32>
    %35 = tpu.matmul %34, %0, %cst_10 {dimension_numbers = #tpu.dot_dimension_numbers<[2], [1], [1], [2], [0, 0, 0, 1, 1, 2], [0], [0]>} : vector<2x1x4xf32>, vector<2x4x256xf32>, vector<2x1x256xf32> -> vector<2x1x256xf32>
    "tpu.trace_stop"() : () -> ()
    %36 = vector.extract_strided_slice %35 {offsets = [0, 0, 0], sizes = [1, 1, 256], strides = [1, 1, 1]} : vector<2x1x256xf32> to vector<1x1x256xf32>
    %37 = vector.shape_cast %36 : vector<1x1x256xf32> to vector<1x256xf32>
    %c0_11 = arith.constant 0 : index
    %c0_12 = arith.constant 0 : index
    %38 = vector.load %arg4[%c0_11, %c0_12] : memref<2x256xf32, #tpu.memory_space<vmem>>, vector<1x256xf32>
    tpu.vector_store %arg4[%c0_11, %c0_12], %37 {strides = array<i32>} : memref<2x256xf32, #tpu.memory_space<vmem>>, vector<1x256xf32>,
    %39 = vector.extract_strided_slice %35 {offsets = [1, 0, 0], sizes = [1, 1, 256], strides = [1, 1, 1]} : vector<2x1x256xf32> to vector<1x1x256xf32>
    %40 = vector.shape_cast %39 : vector<1x1x256xf32> to vector<1x256xf32>
    %c1_13 = arith.constant 1 : index
    %c0_14 = arith.constant 0 : index
    %41 = vector.load %arg4[%c1_13, %c0_14] : memref<2x256xf32, #tpu.memory_space<vmem>>, vector<1x256xf32>
    tpu.vector_store %arg4[%c1_13, %c0_14], %40 {strides = array<i32>} : memref<2x256xf32, #tpu.memory_space<vmem>>, vector<1x256xf32>,
    return
  }
  func.func @transform_0(%arg0: i32) -> (i32, i32, i32) {
    %c0_i32 = arith.constant 0 : i32
    %c0_i32_0 = arith.constant 0 : i32
    %c0_i32_1 = arith.constant 0 : i32
    return %arg0, %c0_i32, %c0_i32_0 : i32, i32, i32
  }
  func.func @transform_1(%arg0: i32) -> i32 {
    %c0_i32 = arith.constant 0 : i32
    %c0_i32_0 = arith.constant 0 : i32
    return %c0_i32 : i32
  }
  func.func @transform_2(%arg0: i32) -> (i32, i32) {
    %c0_i32 = arith.constant 0 : i32
    %c0_i32_0 = arith.constant 0 : i32
    %c0_i32_1 = arith.constant 0 : i32
    return %c0_i32, %c0_i32_0 : i32, i32
  }
  func.func @transform_3(%arg0: i32) -> (i32, i32) {
    %c0_i32 = arith.constant 0 : i32
    %c0_i32_0 = arith.constant 0 : i32
    return %arg0, %c0_i32 : i32, i32
  }
}

</mosaic_0001>

<llo_original>
// kernel: tpu_custom_call.1
$region0: #{tpu_custom_call.1}
  #allocation0 [shape = 'u32[]', space=smem, size = 0x4, offset = 0x4, fixed_abs, tag = 'smem constant byte address 0x4 - core index']
  #allocation1 [shape = 'u32[144,128]{1,0:T(1,128)}', space=vmem, size = 0x12000, scoped, tag = 'internal scratch']
  %s0 = inlined_call_operand.hbm [shape: f32[2,4,256], index: 0, kind: input, shape index: {}]
  %s1 = inlined_call_operand.vmem [shape: f32[4], index: 1, kind: input, shape index: {}]
  %s2 = inlined_call_operand.vmem [shape: f32[1,4], index: 2, kind: input, shape index: {}]
  %s3 = inlined_call_operand.hbm [shape: f32[2,256], index: 3, kind: output, shape index: {}]
  %s4 = sld [smem:[#allocation0]]
  $region30: #{tpu_custom_call.1} parent=0
    _
  %s6 = ssub.s32 1, %s4
  %s7 = scalar_select 0, %s6, %s4
  $region1: #{tpu_custom_call.1} parent=0
    #allocation2 [shape = 'u8[8192]{0}', space=vmem, size = 0x2000, scoped, tag = 'input window, operand 0, single buffered']
    #allocation3 [shape = 's32[1]{0}', space=sflag, size = 0x4, scoped, tag = 'scoped memory for tpu_custom_call.1']
    #allocation4 [shape = 's32[1]{0}', space=sflag, size = 0x4, scoped, tag = 'scoped memory for tpu_custom_call.1']
    #allocation5 [shape = 's32[1]{0}', space=sflag, size = 0x4, scoped, tag = 'scoped memory for tpu_custom_call.1']
    #allocation6 [shape = 'u8[512]{0}', space=smem, size = 0x200, scoped, tag = 'input window, operand 1, single buffered']
    #allocation7 [shape = 'u8[2048]{0}', space=vmem, size = 0x800, scoped, tag = 'output window, operand 0, single buffered']
    %8 = vsyncpa [#allocation3], 0
    %9 = vsyncpa [#allocation5], 0
    %10 = vsyncpa [#allocation4], 0
    // Predicated region
    $region2: #{tpu_custom_call.1} parent=1 // pred_check
      _
    $region3: #{tpu_custom_call.1} parent=1 // pred_check_branch
      %12 = sbr.rel (0) target = $region5
    $region4: #{tpu_custom_call.1} parent=1 // pred_region
      %s14 = ssub.s32 256, 256
      %15 = vsyncadd [#allocation3], %s14
      %s16 = sshll.u32 [#allocation2], 4
      %s17 = int_to_ptr.vmem [resolvable:$true] %s16
      %22 = dma.hbm_to_vmem [thread:$0]  %s0, 256, %s17, [#allocation3], 128, 128, 8
    $region5: #{tpu_custom_call.1} parent=1 // pred_fallthru
      _
    // Predicated region
    $region6: #{tpu_custom_call.1} parent=1 // pred_check
      _
    $region7: #{tpu_custom_call.1} parent=1 // pred_check_branch
      %24 = sbr.rel (0) target = $region9
    $region8: #{tpu_custom_call.1} parent=1 // pred_region
      %s26 = ssub.s32 16, 16
      %27 = vsyncadd [#allocation5], %s26
      %s29 = sshll.u32 %s1, 4
      %s30 = int_to_ptr.vmem [resolvable:$true] %s29
      %32 = dma.vmem_to_smem %s30, 16, [#allocation6], [#allocation5]
    $region9: #{tpu_custom_call.1} parent=1 // pred_fallthru
      _
    // Predicated region
    $region10: #{tpu_custom_call.1} parent=1 // pred_check
      _
    $region11: #{tpu_custom_call.1} parent=1 // pred_check_branch
      %34 = sbr.rel (0) target = $region13
    $region12: #{tpu_custom_call.1} parent=1 // pred_region
      _
    $region13: #{tpu_custom_call.1} parent=1 // pred_fallthru
      _
    // Predicated region
    $region14: #{tpu_custom_call.1} parent=1 // pred_check
      _
    $region15: #{tpu_custom_call.1} parent=1 // pred_check_branch
      %36 = sbr.rel (0) target = $region17
    $region16: #{tpu_custom_call.1} parent=1 // pred_region
      %37 = dma.done [#allocation3], 256
    $region17: #{tpu_custom_call.1} parent=1 // pred_fallthru
      _
    // Predicated region
    $region18: #{tpu_custom_call.1} parent=1 // pred_check
      _
    $region19: #{tpu_custom_call.1} parent=1 // pred_check_branch
      %39 = sbr.rel (0) target = $region21
    $region20: #{tpu_custom_call.1} parent=1 // pred_region
      %40 = dma.done [#allocation5], 16
    $region21: #{tpu_custom_call.1} parent=1 // pred_fallthru
      _
    %41 = sfence
    %v42 = vld [vmem:[#allocation2] sm:$0xff]
    %v43 = vld [vmem:[#allocation2 + $0x8] sm:$0xff]
    %v45 = vcombine.high %v42, %v42
    %47 = vmatprep.subr.mxu0 %v45
    %48 = vmatpush1.xpose.msra.mxu0 %v42
    %49 = vmatprep.subr.mxu0 0.0
    %50 = vmatpush1.xpose.msra.mxu0 0.0
    %51 = vmatprep.subr.mxu0 0.0
    %52 = vmatpush1.xpose.msra.mxu0 0.0
    %53 = vmatprep.subr.mxu0 0.0
    %54 = vmatpush1.xpose.msra.mxu0 0.0
    %55 = vmatprep.subr.mxu0 0.0
    %56 = vmatpush1.xpose.msra.mxu0 0.0
    %57 = vmatprep.subr.mxu0 0.0
    %58 = vmatpush1.xpose.msra.mxu0 0.0
    %59 = vmatprep.subr.mxu0 0.0
    %60 = vmatpush1.xpose.msra.mxu0 0.0
    %61 = vmatprep.subr.mxu0 0.0
    %62 = vmatpush1.xpose.msra.mxu0 0.0
    %63 = vmatprep.subr.mxu0 0.0
    %64 = vmatpush1.xpose.msra.mxu0 0.0
    %65 = vmatprep.subr.mxu0 0.0
    %66 = vmatpush1.xpose.msra.mxu0 0.0
    %67 = vmatprep.subr.mxu0 0.0
    %68 = vmatpush1.xpose.msra.mxu0 0.0
    %69 = vmatprep.subr.mxu0 0.0
    %70 = vmatpush1.xpose.msra.mxu0 0.0
    %71 = vmatprep.subr.mxu0 0.0
    %72 = vmatpush1.xpose.msra.mxu0 0.0
    %73 = vmatprep.subr.mxu0 0.0
    %74 = vmatpush1.xpose.msra.mxu0 0.0
    %75 = vmatprep.subr.mxu0 0.0
    %76 = vmatpush1.xpose.msra.mxu0 0.0
    %77 = vmatprep.subr.mxu0 0.0
    %78 = vmatpush1.xpose.msra.mxu0 0.0
    %79 = vmatprep.subr.mxu0 0.0
    %80 = vmatpush1.xpose.msra.mxu0 0.0
    %81 = vmatprep.subr.mxu0 0.0
    %82 = vmatpush1.xpose.msra.mxu0 0.0
    %83 = vmatprep.subr.mxu0 0.0
    %84 = vmatpush1.xpose.msra.mxu0 0.0
    %85 = vmatprep.subr.mxu0 0.0
    %86 = vmatpush1.xpose.msra.mxu0 0.0
    %87 = vmatprep.subr.mxu0 0.0
    %88 = vmatpush1.xpose.msra.mxu0 0.0
    %89 = vmatprep.subr.mxu0 0.0
    %90 = vmatpush1.xpose.msra.mxu0 0.0
    %91 = vmatprep.subr.mxu0 0.0
    %92 = vmatpush1.xpose.msra.mxu0 0.0
    %93 = vmatprep.subr.mxu0 0.0
    %94 = vmatpush1.xpose.msra.mxu0 0.0
    %95 = vmatprep.subr.mxu0 0.0
    %96 = vmatpush1.xpose.msra.mxu0 0.0
    %97 = vmatprep.subr.mxu0 0.0
    %98 = vmatpush1.xpose.msra.mxu0 0.0
    %99 = vmatprep.subr.mxu0 0.0
    %100 = vmatpush1.xpose.msra.mxu0 0.0
    %101 = vmatprep.subr.mxu0 0.0
    %102 = vmatpush1.xpose.msra.mxu0 0.0
    %103 = vmatprep.subr.mxu0 0.0
    %104 = vmatpush1.xpose.msra.mxu0 0.0
    %105 = vmatprep.subr.mxu0 0.0
    %106 = vmatpush1.xpose.msra.mxu0 0.0
    %107 = vmatprep.subr.mxu0 0.0
    %108 = vmatpush1.xpose.msra.mxu0 0.0
    %109 = vmatprep.subr.mxu0 0.0
    %110 = vmatpush1.xpose.msra.mxu0 0.0
    %111 = vmatprep.mubr.f32.mxu0 1.0
    %112 = vmatmul.mubr.f32.gmra.mrb[0].mxu0 1.0
    %v113 = vpop.f32.mrb[0].mxu0
    %v114 = vadd.f32 0.0, %v113
    %v115 = vpop.f32.mrb[0].mxu0
    %116 = vdwg.mxu0
    %v118 = vcombine.high %v43, %v43
    %120 = vmatprep.subr.mxu0 %v118
    %121 = vmatpush1.xpose.msra.mxu0 %v43
    %122 = vmatprep.subr.mxu0 0.0
    %123 = vmatpush1.xpose.msra.mxu0 0.0
    %124 = vmatprep.subr.mxu0 0.0
    %125 = vmatpush1.xpose.msra.mxu0 0.0
    %126 = vmatprep.subr.mxu0 0.0
    %127 = vmatpush1.xpose.msra.mxu0 0.0
    %128 = vmatprep.subr.mxu0 0.0
    %129 = vmatpush1.xpose.msra.mxu0 0.0
    %130 = vmatprep.subr.mxu0 0.0
    %131 = vmatpush1.xpose.msra.mxu0 0.0
    %132 = vmatprep.subr.mxu0 0.0
    %133 = vmatpush1.xpose.msra.mxu0 0.0
    %134 = vmatprep.subr.mxu0 0.0
    %135 = vmatpush1.xpose.msra.mxu0 0.0
    %136 = vmatprep.subr.mxu0 0.0
    %137 = vmatpush1.xpose.msra.mxu0 0.0
    %138 = vmatprep.subr.mxu0 0.0
    %139 = vmatpush1.xpose.msra.mxu0 0.0
    %140 = vmatprep.subr.mxu0 0.0
    %141 = vmatpush1.xpose.msra.mxu0 0.0
    %142 = vmatprep.subr.mxu0 0.0
    %143 = vmatpush1.xpose.msra.mxu0 0.0
    %144 = vmatprep.subr.mxu0 0.0
    %145 = vmatpush1.xpose.msra.mxu0 0.0
    %146 = vmatprep.subr.mxu0 0.0
    %147 = vmatpush1.xpose.msra.mxu0 0.0
    %148 = vmatprep.subr.mxu0 0.0
    %149 = vmatpush1.xpose.msra.mxu0 0.0
    %150 = vmatprep.subr.mxu0 0.0
    %151 = vmatpush1.xpose.msra.mxu0 0.0
    %152 = vmatprep.subr.mxu0 0.0
    %153 = vmatpush1.xpose.msra.mxu0 0.0
    %154 = vmatprep.subr.mxu0 0.0
    %155 = vmatpush1.xpose.msra.mxu0 0.0
    %156 = vmatprep.subr.mxu0 0.0
    %157 = vmatpush1.xpose.msra.mxu0 0.0
    %158 = vmatprep.subr.mxu0 0.0
    %159 = vmatpush1.xpose.msra.mxu0 0.0
    %160 = vmatprep.subr.mxu0 0.0
    %161 = vmatpush1.xpose.msra.mxu0 0.0
    %162 = vmatprep.subr.mxu0 0.0
    %163 = vmatpush1.xpose.msra.mxu0 0.0
    %164 = vmatprep.subr.mxu0 0.0
    %165 = vmatpush1.xpose.msra.mxu0 0.0
    %166 = vmatprep.subr.mxu0 0.0
    %167 = vmatpush1.xpose.msra.mxu0 0.0
    %168 = vmatprep.subr.mxu0 0.0
    %169 = vmatpush1.xpose.msra.mxu0 0.0
    %170 = vmatprep.subr.mxu0 0.0
    %171 = vmatpush1.xpose.msra.mxu0 0.0
    %172 = vmatprep.subr.mxu0 0.0
    %173 = vmatpush1.xpose.msra.mxu0 0.0
    %174 = vmatprep.subr.mxu0 0.0
    %175 = vmatpush1.xpose.msra.mxu0 0.0
    %176 = vmatprep.subr.mxu0 0.0
    %177 = vmatpush1.xpose.msra.mxu0 0.0
    %178 = vmatprep.subr.mxu0 0.0
    %179 = vmatpush1.xpose.msra.mxu0 0.0
    %180 = vmatprep.subr.mxu0 0.0
    %181 = vmatpush1.xpose.msra.mxu0 0.0
    %182 = vmatprep.subr.mxu0 0.0
    %183 = vmatpush1.xpose.msra.mxu0 0.0
    %184 = vmatprep.mubr.f32.mxu0 1.0
    %185 = vmatmul.mubr.f32.gmra.mrb[0].mxu0 1.0
    %v186 = vpop.f32.mrb[0].mxu0
    %v187 = vadd.f32 0.0, %v186
    %v188 = vpop.f32.mrb[0].mxu0
    %189 = vdwg.mxu0
    %v190 = vmul.f32 %v114, 0.00390625
    %v191 = vmul.f32 %v187, 0.00390625
    %194 = vrot.lane.b32.xlu0 %v190, 1
    %v195 = vpop.permute.xlu0 %194
    %196 = vrot.lane.b32.xlu0 %v191, 1
    %v197 = vpop.permute.xlu0 %196
    %vm200 = vcmask 7168
    %v201 = vsel %vm200, 0.0, %v195
    %v202 = vsel %vm200, 0.0, %v197
    %vm203 = vcmask 39936
    %v204 = vsel %vm203, %v201, 0.0
    %v205 = vsel %vm203, %v202, 0.0
    %s206 = sld [smem:[#allocation6]]
    %v207 = vstv %s206
    %v208 = vmul.f32 %v207, %v204
    %v209 = vmul.f32 %v207, %v205
    %v210 = vadd.f32 %v208, 0.0
    %v211 = vadd.f32 %v209, 0.0
    %s212 = sld [smem:[#allocation6 + $0x1]]
    %v213 = vstv %s212
    %v214 = vmul.f32 %v213, %v204
    %v215 = vmul.f32 %v213, %v205
    %218 = vrot.lane.b32.xlu0 %v214, 127
    %v219 = vpop.permute.xlu0 %218
    %220 = vrot.lane.b32.xlu0 %v215, 127
    %v221 = vpop.permute.xlu0 %220
    %v224 = vadd.f32 %v210, %v219
    %v225 = vadd.f32 %v211, %v221
    %s226 = sld [smem:[#allocation6 + $0x2]]
    %v227 = vstv %s226
    %v228 = vmul.f32 %v227, %v204
    %v229 = vmul.f32 %v227, %v205
    %232 = vrot.lane.b32.xlu0 %v228, 126
    %v233 = vpop.permute.xlu0 %232
    %234 = vrot.lane.b32.xlu0 %v229, 126
    %v235 = vpop.permute.xlu0 %234
    %v238 = vadd.f32 %v224, %v233
    %v239 = vadd.f32 %v225, %v235
    %s240 = sld [smem:[#allocation6 + $0x3]]
    %v241 = vstv %s240
    %v242 = vadd.f32 %v238, %v241
    %v243 = vadd.f32 %v239, %v241
    %v244 = vxor.u32 %v242, 2147483648
    %v245 = vxor.u32 %v243, 2147483648
    %v246 = vmul.f32 %v244, 1.442695
    %v247 = vpow.pop %v246
    %v248 = vmul.f32 %v245, 1.442695
    %v249 = vpow.pop %v248
    %v250 = vadd.f32 %v247, 1.0
    %v251 = vadd.f32 %v249, 1.0
    %v252 = vrcp.pop %v250
    %v253 = vmul.f32 1.0, %v252
    %v254 = vrcp.pop %v251
    %v255 = vmul.f32 1.0, %v254
    %v256 = vld [vmem:[%s2] sm:$0x1]
    %v257 = vmul.f32 %v253, %v256
    %v258 = vmul.f32 %v255, %v256
    %vm259 = vcmask 31744
    %v261 = vsel %vm259, %v257, 0
    %vm263 = vcmask 1043456
    %v264 = vsel %vm263, %v42, 0
    %v266 = vsel %vm263, %v45, 0
    %268 = vmatprep.subr.mxu0 %v266
    %269 = vmatpush1.msra.mxu0 %v264
    %270 = vmatprep.subr.mxu0 0.0
    %271 = vmatpush1.msra.mxu0 0.0
    %272 = vmatprep.subr.mxu0 0.0
    %273 = vmatpush1.msra.mxu0 0.0
    %274 = vmatprep.subr.mxu0 0.0
    %275 = vmatpush1.msra.mxu0 0.0
    %276 = vmatprep.subr.mxu0 0.0
    %277 = vmatpush1.msra.mxu0 0.0
    %278 = vmatprep.subr.mxu0 0.0
    %279 = vmatpush1.msra.mxu0 0.0
    %280 = vmatprep.subr.mxu0 0.0
    %281 = vmatpush1.msra.mxu0 0.0
    %282 = vmatprep.subr.mxu0 0.0
    %283 = vmatpush1.msra.mxu0 0.0
    %284 = vmatprep.subr.mxu0 0.0
    %285 = vmatpush1.msra.mxu0 0.0
    %286 = vmatprep.subr.mxu0 0.0
    %287 = vmatpush1.msra.mxu0 0.0
    %288 = vmatprep.subr.mxu0 0.0
    %289 = vmatpush1.msra.mxu0 0.0
    %290 = vmatprep.subr.mxu0 0.0
    %291 = vmatpush1.msra.mxu0 0.0
    %292 = vmatprep.subr.mxu0 0.0
    %293 = vmatpush1.msra.mxu0 0.0
    %294 = vmatprep.subr.mxu0 0.0
    %295 = vmatpush1.msra.mxu0 0.0
    %296 = vmatprep.subr.mxu0 0.0
    %297 = vmatpush1.msra.mxu0 0.0
    %298 = vmatprep.subr.mxu0 0.0
    %299 = vmatpush1.msra.mxu0 0.0
    %300 = vmatprep.subr.mxu0 0.0
    %301 = vmatpush1.msra.mxu0 0.0
    %302 = vmatprep.subr.mxu0 0.0
    %303 = vmatpush1.msra.mxu0 0.0
    %304 = vmatprep.subr.mxu0 0.0
    %305 = vmatpush1.msra.mxu0 0.0
    %306 = vmatprep.subr.mxu0 0.0
    %307 = vmatpush1.msra.mxu0 0.0
    %308 = vmatprep.subr.mxu0 0.0
    %309 = vmatpush1.msra.mxu0 0.0
    %310 = vmatprep.subr.mxu0 0.0
    %311 = vmatpush1.msra.mxu0 0.0
    %312 = vmatprep.subr.mxu0 0.0
    %313 = vmatpush1.msra.mxu0 0.0
    %314 = vmatprep.subr.mxu0 0.0
    %315 = vmatpush1.msra.mxu0 0.0
    %316 = vmatprep.subr.mxu0 0.0
    %317 = vmatpush1.msra.mxu0 0.0
    %318 = vmatprep.subr.mxu0 0.0
    %319 = vmatpush1.msra.mxu0 0.0
    %320 = vmatprep.subr.mxu0 0.0
    %321 = vmatpush1.msra.mxu0 0.0
    %322 = vmatprep.subr.mxu0 0.0
    %323 = vmatpush1.msra.mxu0 0.0
    %324 = vmatprep.subr.mxu0 0.0
    %325 = vmatpush1.msra.mxu0 0.0
    %326 = vmatprep.subr.mxu0 0.0
    %327 = vmatpush1.msra.mxu0 0.0
    %328 = vmatprep.subr.mxu0 0.0
    %329 = vmatpush1.msra.mxu0 0.0
    %330 = vmatprep.subr.mxu0 0.0
    %331 = vmatpush1.msra.mxu0 0.0
    %332 = vmatprep.mubr.f32.mxu0 0.0
    %333 = vmatmul.mubr.f32.gmra.mrb[0].mxu0 %v261
    %v334 = vpop.f32.mrb[0].mxu0
    %v335 = vadd.f32 0.0, %v334
    %v336 = vpop.f32.mrb[0].mxu0
    %v337 = vadd.f32 0.0, %v336
    %338 = vdwg.mxu0
    %v340 = vsel %vm259, %v258, 0
    %v342 = vsel %vm263, %v43, 0
    %v344 = vsel %vm263, %v118, 0
    %346 = vmatprep.subr.mxu0 %v344
    %347 = vmatpush1.msra.mxu0 %v342
    %348 = vmatprep.subr.mxu0 0.0
    %349 = vmatpush1.msra.mxu0 0.0
    %350 = vmatprep.subr.mxu0 0.0
    %351 = vmatpush1.msra.mxu0 0.0
    %352 = vmatprep.subr.mxu0 0.0
    %353 = vmatpush1.msra.mxu0 0.0
    %354 = vmatprep.subr.mxu0 0.0
    %355 = vmatpush1.msra.mxu0 0.0
    %356 = vmatprep.subr.mxu0 0.0
    %357 = vmatpush1.msra.mxu0 0.0
    %358 = vmatprep.subr.mxu0 0.0
    %359 = vmatpush1.msra.mxu0 0.0
    %360 = vmatprep.subr.mxu0 0.0
    %361 = vmatpush1.msra.mxu0 0.0
    %362 = vmatprep.subr.mxu0 0.0
    %363 = vmatpush1.msra.mxu0 0.0
    %364 = vmatprep.subr.mxu0 0.0
    %365 = vmatpush1.msra.mxu0 0.0
    %366 = vmatprep.subr.mxu0 0.0
    %367 = vmatpush1.msra.mxu0 0.0
    %368 = vmatprep.subr.mxu0 0.0
    %369 = vmatpush1.msra.mxu0 0.0
    %370 = vmatprep.subr.mxu0 0.0
    %371 = vmatpush1.msra.mxu0 0.0
    %372 = vmatprep.subr.mxu0 0.0
    %373 = vmatpush1.msra.mxu0 0.0
    %374 = vmatprep.subr.mxu0 0.0
    %375 = vmatpush1.msra.mxu0 0.0
    %376 = vmatprep.subr.mxu0 0.0
    %377 = vmatpush1.msra.mxu0 0.0
    %378 = vmatprep.subr.mxu0 0.0
    %379 = vmatpush1.msra.mxu0 0.0
    %380 = vmatprep.subr.mxu0 0.0
    %381 = vmatpush1.msra.mxu0 0.0
    %382 = vmatprep.subr.mxu0 0.0
    %383 = vmatpush1.msra.mxu0 0.0
    %384 = vmatprep.subr.mxu0 0.0
    %385 = vmatpush1.msra.mxu0 0.0
    %386 = vmatprep.subr.mxu0 0.0
    %387 = vmatpush1.msra.mxu0 0.0
    %388 = vmatprep.subr.mxu0 0.0
    %389 = vmatpush1.msra.mxu0 0.0
    %390 = vmatprep.subr.mxu0 0.0
    %391 = vmatpush1.msra.mxu0 0.0
    %392 = vmatprep.subr.mxu0 0.0
    %393 = vmatpush1.msra.mxu0 0.0
    %394 = vmatprep.subr.mxu0 0.0
    %395 = vmatpush1.msra.mxu0 0.0
    %396 = vmatprep.subr.mxu0 0.0
    %397 = vmatpush1.msra.mxu0 0.0
    %398 = vmatprep.subr.mxu0 0.0
    %399 = vmatpush1.msra.mxu0 0.0
    %400 = vmatprep.subr.mxu0 0.0
    %401 = vmatpush1.msra.mxu0 0.0
    %402 = vmatprep.subr.mxu0 0.0
    %403 = vmatpush1.msra.mxu0 0.0
    %404 = vmatprep.subr.mxu0 0.0
    %405 = vmatpush1.msra.mxu0 0.0
    %406 = vmatprep.subr.mxu0 0.0
    %407 = vmatpush1.msra.mxu0 0.0
    %408 = vmatprep.subr.mxu0 0.0
    %409 = vmatpush1.msra.mxu0 0.0
    %410 = vmatprep.mubr.f32.mxu0 0.0
    %411 = vmatmul.mubr.f32.gmra.mrb[0].mxu0 %v340
    %v412 = vpop.f32.mrb[0].mxu0
    %v413 = vadd.f32 0.0, %v412
    %v414 = vpop.f32.mrb[0].mxu0
    %v415 = vadd.f32 0.0, %v414
    %416 = vdwg.mxu0
    %v419 = vcombine.low %v335, %v337
    %v421 = vunpack.c.l.s4 1966171168
    %v422 = vunpack.c.0.s8 %v421
    %v423 = vlaneseq
    %v424 = vshrl.u32 %v423, 7
    %v425 = vsub.s32 %v422, %v424
    %v426 = vrot.slane %v419, %v425
    %v428 = vunpack.c.l.s4 1966171168
    %v429 = vunpack.c.0.s8 %v428
    %v430 = vlaneseq
    %v431 = vshrl.u32 %v430, 7
    %v432 = vsub.s32 %v429, %v431
    %v433 = vrot.slane %v426, %v432
    %v435 = vlaneseq
    %vm436 = vcmp.ge.s32.totalorder %v435, 0
    %vm437 = vcmp.lt.s32.totalorder %v435, 256
    %vm438 = vmand %vm436, %vm437
    %439 = vst.msk [vmem:[#allocation7] ss:$2 sm:$0x3] %vm438, %v433
    %v442 = vcombine.low %v413, %v415
    %v444 = vunpack.c.l.s4 1966171168
    %v445 = vunpack.c.0.s8 %v444
    %v446 = vlaneseq
    %v447 = vshrl.u32 %v446, 7
    %v448 = vsub.s32 %v445, %v447
    %v449 = vrot.slane %v442, %v448
    %v451 = vunpack.c.l.s4 1966171168
    %v452 = vunpack.c.0.s8 %v451
    %v453 = vlaneseq
    %v454 = vshrl.u32 %v453, 7
    %v455 = vsub.s32 %v452, %v454
    %v456 = vrot.slane %v449, %v455
    %s458 = scalar_lea.vmem [#allocation7], 1
    %459 = vst.msk [vmem:[%s458] ss:$2 sm:$0x3] %vm438, %v456
    // Predicated region
    $region22: #{tpu_custom_call.1} parent=1 // pred_check
      _
    $region23: #{tpu_custom_call.1} parent=1 // pred_check_branch
      %461 = sbr.rel (0) target = $region25
    $region24: #{tpu_custom_call.1} parent=1 // pred_region
      %s463 = ssub.s32 64, 64
      %464 = vsyncadd [#allocation4], %s463
      %s466 = sshll.u32 [#allocation7], 4
      %s467 = int_to_ptr.vmem [resolvable:$true] %s466
      %469 = dma.vmem_to_hbm [thread:$0]  %s467, 64, %s3, [#allocation4]
    $region25: #{tpu_custom_call.1} parent=1 // pred_fallthru
      _
    // Predicated region
    $region26: #{tpu_custom_call.1} parent=1 // pred_check
      _
    $region27: #{tpu_custom_call.1} parent=1 // pred_check_branch
      %471 = sbr.rel (0) target = $region29
    $region28: #{tpu_custom_call.1} parent=1 // pred_region
      %472 = dma.done [#allocation4], 64
    $region29: #{tpu_custom_call.1} parent=1 // pred_fallthru
      _
    %473 = vsyncpa [#allocation3], 1
    %474 = vsyncpa [#allocation4], 1
    %475 = vsyncpa [#allocation5], 1

</llo_original>
